<compile_context>
chip_gen: v7x
topology: tpu7x:2x2x1
jax: 0.10.0
libtpu: 0.0.40
codegen_flags: <defaults>
</compile_context>

<pallas_src>
import math
from functools import partial

import jax
import jax.numpy as jnp
from jax.experimental import pallas as pl
from jax.experimental.pallas import tpu as pltpu

HIDDEN = 128  # nn.Linear(STATE_NUM, 128)


def _round_up(n, m):
    return ((n + m - 1) // m) * m


def _make_kernel(s, h, a, a_pad, off_b1, off_w2, off_b2):
    def kernel(x_ref, p_ref, out_ref):
        # Static slices of the packed params slab (free at runtime).
        x = x_ref[...]                                   # [TB, S]      f32
        w1 = p_ref[0:s, 0:h]                             # [S, H]       f32
        b1 = p_ref[off_b1:off_b1 + 1, 0:h]               # [1, H]       f32
        w2 = p_ref[off_w2:off_w2 + h, 0:a_pad]           # [H, A_pad]   f32
        b2 = p_ref[off_b2:off_b2 + 1, 0:a_pad]           # [1, A_pad]   f32

        # fc1 + relu (f32 MXU accumulate, f32 element-wise)
        hid = jnp.dot(x, w1, preferred_element_type=jnp.float32)
        hid = jnp.maximum(hid + b1, 0.0)

        # fc2: compute at lane-dense A_pad width, store only the real A columns.
        out = jnp.dot(hid, w2, preferred_element_type=jnp.float32)
        out_ref[...] = (out + b2)[:, :a].astype(out_ref.dtype)

    return kernel


@partial(jax.jit, static_argnames=("block_b",))
def net_forward(x, w1, b1, w2, b2, *, block_b=2048):
    """Fused forward pass of Net: relu(x @ w1 + b1) @ w2 + b2.

    x:  [B, STATE_NUM]        float32
    w1: [STATE_NUM, 128]      float32
    b1: [1, 128]              float32
    w2: [128, ACTION_NUM]     float32
    b2: [1, ACTION_NUM]       float32
    returns: [B, ACTION_NUM]  float32
    """
    B, S = x.shape
    S_w, H = w1.shape
    assert S_w == S and w2.shape[0] == H and H == HIDDEN
    A = w2.shape[1]

    S_pad = _round_up(S, 8)
    A_pad = _round_up(A, 128)
    lanes = max(H, A_pad)

    # Packed params slab, all sections 8-row aligned. Unused rows/lanes are zero.
    off_b1 = S_pad
    off_w2 = S_pad + 8
    off_b2 = off_w2 + H
    p_rows = off_b2 + 8
    params = jnp.zeros((p_rows, lanes), jnp.float32)
    params = params.at[0:S, 0:H].set(w1.astype(jnp.float32))
    params = params.at[off_b1, 0:H].set(b1.reshape(-1).astype(jnp.float32))
    params = params.at[off_w2:off_w2 + H, 0:A].set(w2.astype(jnp.float32))
    params = params.at[off_b2, 0:A].set(b2.reshape(-1).astype(jnp.float32))

    kernel = _make_kernel(S, H, A, A_pad, off_b1, off_w2, off_b2)
    out_shape = jax.ShapeDtypeStruct((B, A), x.dtype)

    # Fast path for tiny batches (DDQN action selection): single whole-array
    # call, no grid, no padding, no slicing.
    if B <= 8:
        return pl.pallas_call(kernel, out_shape=out_shape)(x, params)

    # Batch-tiled path. TB is a multiple of 8 and capped so there are always
    # >= 2 blocks (lets the "parallel" axis use both v7x TensorCores).
    TB = min(block_b, _round_up(pl.cdiv(B, 2), 8))
    nb = pl.cdiv(B, TB)  # ragged final block handled by Pallas (masked writes)

    return pl.pallas_call(
        kernel,
        out_shape=out_shape,
        grid=(nb,),
        in_specs=[
            pl.BlockSpec((TB, S), lambda i: (i, 0)),        # batch-tiled x (no pad)
            pl.BlockSpec((p_rows, lanes), lambda i: (0, 0)),  # resident params slab
        ],
        out_specs=pl.BlockSpec((TB, A), lambda i: (i, 0)),  # real-width output
        compiler_params=pltpu.CompilerParams(
            dimension_semantics=("parallel",),
        ),
    )(x, params)


def init_params(key, state_num, action_num, dtype=jnp.float32):
    """Deterministic init mirroring PyTorch nn.Linear default (uniform +/- 1/sqrt(fan_in))."""
    k1, k2, k3, k4 = jax.random.split(key, 4)
    bound1 = 1.0 / math.sqrt(state_num)
    bound2 = 1.0 / math.sqrt(HIDDEN)
    w1 = jax.random.uniform(k1, (state_num, HIDDEN), dtype, -bound1, bound1)
    b1 = jax.random.uniform(k2, (1, HIDDEN), dtype, -bound1, bound1)
    w2 = jax.random.uniform(k3, (HIDDEN, action_num), dtype, -bound2, bound2)
    b2 = jax.random.uniform(k4, (1, action_num), dtype, -bound2, bound2)
    return w1, b1, w2, b2


def net_forward_ref(x, w1, b1, w2, b2):
    h = jnp.maximum(x @ w1 + b1, 0.0)
    return h @ w2 + b2


if __name__ == "__main__":
    STATE_NUM = 16
    ACTION_NUM = 8
    BATCH = 8

    key = jax.random.PRNGKey(0)
    kx, kp = jax.random.split(key)
    w1, b1, w2, b2 = init_params(kp, STATE_NUM, ACTION_NUM)

    # 1) Tiny batch -> fast path (single whole-array call).
    x = jax.random.normal(kx, (BATCH, STATE_NUM), jnp.float32)
    ref = net_forward_ref(x, w1, b1, w2, b2)
    out = jax.block_until_ready(net_forward(x, w1, b1, w2, b2))
    assert out.shape == (BATCH, ACTION_NUM)
    assert jnp.allclose(out, ref, atol=1e-5, rtol=1e-5)

    # 2) Mid batch, not a multiple of 8 -> tiled path with 2 blocks + ragged tail.
    xb = jax.random.normal(kx, (700, STATE_NUM), jnp.float32)
    outb = jax.block_until_ready(net_forward(xb, w1, b1, w2, b2))
    refb = net_forward_ref(xb, w1, b1, w2, b2)
    assert outb.shape == (700, ACTION_NUM)
    assert jnp.allclose(outb, refb, atol=1e-5, rtol=1e-5)

    # 3) Large batch -> TB capped at block_b (2048), multiple grid steps + ragged tail.
    xc = jax.random.normal(kx, (4500, STATE_NUM), jnp.float32)
    outc = jax.block_until_ready(net_forward(xc, w1, b1, w2, b2))
    refc = net_forward_ref(xc, w1, b1, w2, b2)
    assert outc.shape == (4500, ACTION_NUM)
    assert jnp.allclose(outc, refc, atol=1e-5, rtol=1e-5)

    print("KERNEL_OK")
</pallas_src>

<mosaic_0001>
module attributes {stable_mosaic.version = 11 : i64} {
  func.func @kernel(%arg0: memref<8x16xf32, #tpu.memory_space<vmem>>, %arg1: memref<160x128xf32, #tpu.memory_space<vmem>>, %arg2: memref<8x8xf32, #tpu.memory_space<vmem>>) attributes {dimension_semantics = [], scalar_prefetch = 0 : i64, scratch_operands = 0 : i64, tpu.core_type = #tpu.core_type<tc>} {
    %c0 = arith.constant 0 : index
    %c0_0 = arith.constant 0 : index
    %0 = vector.load %arg0[%c0, %c0_0] : memref<8x16xf32, #tpu.memory_space<vmem>>, vector<8x16xf32>
    %c0_1 = arith.constant 0 : index
    %c0_2 = arith.constant 0 : index
    %1 = vector.load %arg1[%c0_1, %c0_2] : memref<160x128xf32, #tpu.memory_space<vmem>>, vector<16x128xf32>
    %c16 = arith.constant 16 : index
    %c0_3 = arith.constant 0 : index
    %2 = vector.load %arg1[%c16, %c0_3] : memref<160x128xf32, #tpu.memory_space<vmem>>, vector<1x128xf32>
    %c24 = arith.constant 24 : index
    %c0_4 = arith.constant 0 : index
    %3 = vector.load %arg1[%c24, %c0_4] : memref<160x128xf32, #tpu.memory_space<vmem>>, vector<128x128xf32>
    %c152 = arith.constant 152 : index
    %c0_5 = arith.constant 0 : index
    %4 = vector.load %arg1[%c152, %c0_5] : memref<160x128xf32, #tpu.memory_space<vmem>>, vector<1x128xf32>
    %cst = arith.constant dense<0.000000e+00> : vector<8x128xf32>
    %5 = tpu.matmul %0, %1, %cst {dimension_numbers = #tpu.dot_dimension_numbers<[1], [0], [0], [1], [0, 0, 1, 1], [], []>} : vector<8x16xf32>, vector<16x128xf32>, vector<8x128xf32> -> vector<8x128xf32>
    %6 = vector.broadcast %2 : vector<1x128xf32> to vector<8x128xf32>
    %7 = arith.addf %5, %6 : vector<8x128xf32>
    %cst_6 = arith.constant 0.000000e+00 : f32
    %8 = vector.broadcast %cst_6 : f32 to vector<8x128xf32>
    %9 = arith.maximumf %7, %8 : vector<8x128xf32>
    %cst_7 = arith.constant dense<0.000000e+00> : vector<8x128xf32>
    %10 = tpu.matmul %9, %3, %cst_7 {dimension_numbers = #tpu.dot_dimension_numbers<[1], [0], [0], [1], [0, 0, 1, 1], [], []>} : vector<8x128xf32>, vector<128x128xf32>, vector<8x128xf32> -> vector<8x128xf32>
    %11 = vector.broadcast %4 : vector<1x128xf32> to vector<8x128xf32>
    %12 = arith.addf %10, %11 : vector<8x128xf32>
    %13 = vector.extract_strided_slice %12 {offsets = [0, 0], sizes = [8, 8], strides = [1, 1]} : vector<8x128xf32> to vector<8x8xf32>
    %c0_8 = arith.constant 0 : index
    %c0_9 = arith.constant 0 : index
    %14 = vector.load %arg2[%c0_8, %c0_9] : memref<8x8xf32, #tpu.memory_space<vmem>>, vector<8x8xf32>
    tpu.vector_store %arg2[%c0_8, %c0_9], %13 {strides = array<i32>} : memref<8x8xf32, #tpu.memory_space<vmem>>, vector<8x8xf32>,
    return
  }
}

</mosaic_0001>

<llo_original>
// kernel: net_forward.1
$region0: #{net_forward.1}
  #allocation0 [shape = 'u32[]', space=smem, size = 0x4, offset = 0x4, fixed_abs, tag = 'smem constant byte address 0x4 - core index']
  #allocation1 [shape = 'u32[144,128]{1,0:T(1,128)}', space=vmem, size = 0x12000, scoped, tag = 'internal scratch']
  %s0 = inlined_call_operand.vmem [shape: f32[8,16], index: 0, kind: input, shape index: {}]
  %s1 = inlined_call_operand.vmem [shape: f32[160,128], index: 1, kind: input, shape index: {}]
  %s2 = inlined_call_operand.hbm [shape: f32[8,8], index: 2, kind: output, shape index: {}]
  %s3 = sld [smem:[#allocation0]]
  $region18: #{net_forward.1} parent=0
    _
  %s5 = ssub.s32 1, %s3
  %s6 = scalar_select 0, %s5, %s3
  $region1: #{net_forward.1} parent=0
    #allocation2 [shape = 'u8[4096]{0}', space=vmem, size = 0x1000, scoped, tag = 'output window, operand 0, single buffered']
    #allocation3 [shape = 's32[1]{0}', space=sflag, size = 0x4, scoped, tag = 'scoped memory for net_forward.1']
    %7 = vsyncpa [#allocation3], 0
    // Predicated region
    $region2: #{net_forward.1} parent=1 // pred_check
      _
    $region3: #{net_forward.1} parent=1 // pred_check_branch
      %9 = sbr.rel (0) target = $region5
    $region4: #{net_forward.1} parent=1 // pred_region
      _
    $region5: #{net_forward.1} parent=1 // pred_fallthru
      _
    // Predicated region
    $region6: #{net_forward.1} parent=1 // pred_check
      _
    $region7: #{net_forward.1} parent=1 // pred_check_branch
      %11 = sbr.rel (0) target = $region9
    $region8: #{net_forward.1} parent=1 // pred_region
      _
    $region9: #{net_forward.1} parent=1 // pred_fallthru
      _
    %v12 = vld [vmem:[%s0] sm:$0xff]
    %v13 = vld [vmem:[%s1] sm:$0xff]
    %v14 = vld [vmem:[%s1 + $0x8] sm:$0xff]
    %v15 = vld [vmem:[%s1 + $0x10] sm:$0x1]
    %v16 = vld [vmem:[%s1 + $0x18] sm:$0xff]
    %v17 = vld [vmem:[%s1 + $0x20] sm:$0xff]
    %v18 = vld [vmem:[%s1 + $0x28] sm:$0xff]
    %v19 = vld [vmem:[%s1 + $0x30] sm:$0xff]
    %v20 = vld [vmem:[%s1 + $0x38] sm:$0xff]
    %v21 = vld [vmem:[%s1 + $0x40] sm:$0xff]
    %v22 = vld [vmem:[%s1 + $0x48] sm:$0xff]
    %v23 = vld [vmem:[%s1 + $0x50] sm:$0xff]
    %v24 = vld [vmem:[%s1 + $0x58] sm:$0xff]
    %v25 = vld [vmem:[%s1 + $0x60] sm:$0xff]
    %v26 = vld [vmem:[%s1 + $0x68] sm:$0xff]
    %v27 = vld [vmem:[%s1 + $0x70] sm:$0xff]
    %v28 = vld [vmem:[%s1 + $0x78] sm:$0xff]
    %v29 = vld [vmem:[%s1 + $0x80] sm:$0xff]
    %v30 = vld [vmem:[%s1 + $0x88] sm:$0xff]
    %v31 = vld [vmem:[%s1 + $0x90] sm:$0xff]
    %v32 = vld [vmem:[%s1 + $0x98] sm:$0x1]
    %v33 = vlaneseq
    %v34 = vshrl.u32 %v33, 7
    %v35 = vsub.s32 0, %v34
    %v36 = vrot.slane %v15, %v35
    %vm37 = vcmask 130048
    %v39 = vsel %vm37, %v12, 0
    %41 = vmatprep.subr.mxu0 0.0
    %42 = vmatpush1.msra.mxu0 %v13
    %43 = vmatprep.subr.mxu0 0.0
    %44 = vmatpush1.msra.mxu0 %v14
    %45 = vmatprep.subr.mxu0 0.0
    %46 = vmatpush1.msra.mxu0 0.0
    %47 = vmatprep.subr.mxu0 0.0
    %48 = vmatpush1.msra.mxu0 0.0
    %49 = vmatprep.subr.mxu0 0.0
    %50 = vmatpush1.msra.mxu0 0.0
    %51 = vmatprep.subr.mxu0 0.0
    %52 = vmatpush1.msra.mxu0 0.0
    %53 = vmatprep.subr.mxu0 0.0
    %54 = vmatpush1.msra.mxu0 0.0
    %55 = vmatprep.subr.mxu0 0.0
    %56 = vmatpush1.msra.mxu0 0.0
    %57 = vmatprep.subr.mxu0 0.0
    %58 = vmatpush1.msra.mxu0 0.0
    %59 = vmatprep.subr.mxu0 0.0
    %60 = vmatpush1.msra.mxu0 0.0
    %61 = vmatprep.subr.mxu0 0.0
    %62 = vmatpush1.msra.mxu0 0.0
    %63 = vmatprep.subr.mxu0 0.0
    %64 = vmatpush1.msra.mxu0 0.0
    %65 = vmatprep.subr.mxu0 0.0
    %66 = vmatpush1.msra.mxu0 0.0
    %67 = vmatprep.subr.mxu0 0.0
    %68 = vmatpush1.msra.mxu0 0.0
    %69 = vmatprep.subr.mxu0 0.0
    %70 = vmatpush1.msra.mxu0 0.0
    %71 = vmatprep.subr.mxu0 0.0
    %72 = vmatpush1.msra.mxu0 0.0
    %73 = vmatprep.subr.mxu0 0.0
    %74 = vmatpush1.msra.mxu0 0.0
    %75 = vmatprep.subr.mxu0 0.0
    %76 = vmatpush1.msra.mxu0 0.0
    %77 = vmatprep.subr.mxu0 0.0
    %78 = vmatpush1.msra.mxu0 0.0
    %79 = vmatprep.subr.mxu0 0.0
    %80 = vmatpush1.msra.mxu0 0.0
    %81 = vmatprep.subr.mxu0 0.0
    %82 = vmatpush1.msra.mxu0 0.0
    %83 = vmatprep.subr.mxu0 0.0
    %84 = vmatpush1.msra.mxu0 0.0
    %85 = vmatprep.subr.mxu0 0.0
    %86 = vmatpush1.msra.mxu0 0.0
    %87 = vmatprep.subr.mxu0 0.0
    %88 = vmatpush1.msra.mxu0 0.0
    %89 = vmatprep.subr.mxu0 0.0
    %90 = vmatpush1.msra.mxu0 0.0
    %91 = vmatprep.subr.mxu0 0.0
    %92 = vmatpush1.msra.mxu0 0.0
    %93 = vmatprep.subr.mxu0 0.0
    %94 = vmatpush1.msra.mxu0 0.0
    %95 = vmatprep.subr.mxu0 0.0
    %96 = vmatpush1.msra.mxu0 0.0
    %97 = vmatprep.subr.mxu0 0.0
    %98 = vmatpush1.msra.mxu0 0.0
    %99 = vmatprep.subr.mxu0 0.0
    %100 = vmatpush1.msra.mxu0 0.0
    %101 = vmatprep.subr.mxu0 0.0
    %102 = vmatpush1.msra.mxu0 0.0
    %103 = vmatprep.subr.mxu0 0.0
    %104 = vmatpush1.msra.mxu0 0.0
    %105 = vmatprep.mubr.f32.mxu0 0.0
    %106 = vmatmul.mubr.f32.gmra.mrb[0].mxu0 %v39
    %v107 = vpop.f32.mrb[0].mxu0
    %v108 = vadd.f32 %v36, %v107
    %v109 = vpop.f32.mrb[0].mxu0
    %110 = vdwg.mxu0
    %v111 = vmax.f32 %v108, 0.0
    %v112 = vlaneseq
    %v113 = vshrl.u32 %v112, 7
    %v114 = vsub.s32 0, %v113
    %v115 = vrot.slane %v32, %v114
    %116 = vmatprep.subr.mxu0 0.0
    %117 = vmatpush1.msra.mxu0 %v16
    %118 = vmatprep.subr.mxu0 0.0
    %119 = vmatpush1.msra.mxu0 %v17
    %120 = vmatprep.subr.mxu0 0.0
    %121 = vmatpush1.msra.mxu0 %v18
    %122 = vmatprep.subr.mxu0 0.0
    %123 = vmatpush1.msra.mxu0 %v19
    %124 = vmatprep.subr.mxu0 0.0
    %125 = vmatpush1.msra.mxu0 %v20
    %126 = vmatprep.subr.mxu0 0.0
    %127 = vmatpush1.msra.mxu0 %v21
    %128 = vmatprep.subr.mxu0 0.0
    %129 = vmatpush1.msra.mxu0 %v22
    %130 = vmatprep.subr.mxu0 0.0
    %131 = vmatpush1.msra.mxu0 %v23
    %132 = vmatprep.subr.mxu0 0.0
    %133 = vmatpush1.msra.mxu0 %v24
    %134 = vmatprep.subr.mxu0 0.0
    %135 = vmatpush1.msra.mxu0 %v25
    %136 = vmatprep.subr.mxu0 0.0
    %137 = vmatpush1.msra.mxu0 %v26
    %138 = vmatprep.subr.mxu0 0.0
    %139 = vmatpush1.msra.mxu0 %v27
    %140 = vmatprep.subr.mxu0 0.0
    %141 = vmatpush1.msra.mxu0 %v28
    %142 = vmatprep.subr.mxu0 0.0
    %143 = vmatpush1.msra.mxu0 %v29
    %144 = vmatprep.subr.mxu0 0.0
    %145 = vmatpush1.msra.mxu0 %v30
    %146 = vmatprep.subr.mxu0 0.0
    %147 = vmatpush1.msra.mxu0 %v31
    %148 = vmatprep.subr.mxu0 0.0
    %149 = vmatpush1.msra.mxu0 0.0
    %150 = vmatprep.subr.mxu0 0.0
    %151 = vmatpush1.msra.mxu0 0.0
    %152 = vmatprep.subr.mxu0 0.0
    %153 = vmatpush1.msra.mxu0 0.0
    %154 = vmatprep.subr.mxu0 0.0
    %155 = vmatpush1.msra.mxu0 0.0
    %156 = vmatprep.subr.mxu0 0.0
    %157 = vmatpush1.msra.mxu0 0.0
    %158 = vmatprep.subr.mxu0 0.0
    %159 = vmatpush1.msra.mxu0 0.0
    %160 = vmatprep.subr.mxu0 0.0
    %161 = vmatpush1.msra.mxu0 0.0
    %162 = vmatprep.subr.mxu0 0.0
    %163 = vmatpush1.msra.mxu0 0.0
    %164 = vmatprep.subr.mxu0 0.0
    %165 = vmatpush1.msra.mxu0 0.0
    %166 = vmatprep.subr.mxu0 0.0
    %167 = vmatpush1.msra.mxu0 0.0
    %168 = vmatprep.subr.mxu0 0.0
    %169 = vmatpush1.msra.mxu0 0.0
    %170 = vmatprep.subr.mxu0 0.0
    %171 = vmatpush1.msra.mxu0 0.0
    %172 = vmatprep.subr.mxu0 0.0
    %173 = vmatpush1.msra.mxu0 0.0
    %174 = vmatprep.subr.mxu0 0.0
    %175 = vmatpush1.msra.mxu0 0.0
    %176 = vmatprep.subr.mxu0 0.0
    %177 = vmatpush1.msra.mxu0 0.0
    %178 = vmatprep.subr.mxu0 0.0
    %179 = vmatpush1.msra.mxu0 0.0
    %180 = vmatprep.mubr.f32.mxu0 0.0
    %181 = vmatmul.mubr.f32.gmra.mrb[0].mxu0 %v111
    %v182 = vpop.f32.mrb[0].mxu0
    %v183 = vadd.f32 %v115, %v182
    %v184 = vpop.f32.mrb[0].mxu0
    %185 = vdwg.mxu0
    %vm186 = vcmask 64512
    %187 = vst.msk [vmem:[#allocation2] sm:$0xff] %vm186, %v183
    // Predicated region
    $region10: #{net_forward.1} parent=1 // pred_check
      _
    $region11: #{net_forward.1} parent=1 // pred_check_branch
      %189 = sbr.rel (0) target = $region13
    $region12: #{net_forward.1} parent=1 // pred_region
      %s191 = ssub.s32 128, 128
      %192 = vsyncadd [#allocation3], %s191
      %s194 = sshll.u32 [#allocation2], 4
      %s195 = int_to_ptr.vmem [resolvable:$true] %s194
      %197 = dma.vmem_to_hbm [thread:$0]  %s195, 128, %s2, [#allocation3]
    $region13: #{net_forward.1} parent=1 // pred_fallthru
      _
    // Predicated region
    $region14: #{net_forward.1} parent=1 // pred_check
      _
    $region15: #{net_forward.1} parent=1 // pred_check_branch
      %199 = sbr.rel (0) target = $region17
    $region16: #{net_forward.1} parent=1 // pred_region
      %200 = dma.done [#allocation3], 128
    $region17: #{net_forward.1} parent=1 // pred_fallthru
      _
    %201 = vsyncpa [#allocation3], 1

</llo_original>
